<compile_context>
chip_gen: v7x
topology: tpu7x:2x2x1
jax: 0.10.0
libtpu: 0.0.40
codegen_flags: <defaults>
</compile_context>

<pallas_src>
import jax
import jax.numpy as jnp
from jax import lax
from jax.experimental import pallas as pl
from jax.experimental.pallas import tpu as pltpu

LANE = 128


def mlp_kernel(x_ref, w1_ref, b1_ref, w2_ref, b2_ref, w3t_ref, b3_ref, o_ref):
    # One batch tile (TB rows) per grid step; weights are resident in VMEM.
    # MXU dots use bf16 operands with f32 accumulation; bias+ReLU on the VPU in f32.
    x = x_ref[...].astype(jnp.bfloat16)                     # (TB, in_dim)

    h1 = jnp.dot(x, w1_ref[...], preferred_element_type=jnp.float32)
    h1 = jnp.maximum(h1 + b1_ref[...], 0.0)                 # (TB, H1) f32
    # Dropout(0.2): eval-mode identity (skipped).

    h2 = jnp.dot(h1.astype(jnp.bfloat16), w2_ref[...],
                 preferred_element_type=jnp.float32)
    h2 = jnp.maximum(h2 + b2_ref[...], 0.0)                 # (TB, H2) f32

    # Final layer in transposed orientation: contract w3^T (O, H2) with
    # h2 (TB, H2) over H2 -> (O, TB).  Batch rows land on the lane axis, so
    # the output store is a fully lane-dense tile (no 128x zero-pad write
    # amplification for out_dim=1).
    out_t = lax.dot_general(
        w3t_ref[...], h2.astype(jnp.bfloat16),
        dimension_numbers=(((1,), (1,)), ((), ())),
        preferred_element_type=jnp.float32)                 # (O, TB)
    o_ref[...] = (out_t + b3_ref[...]).astype(o_ref.dtype)


def _round_up(n, m):
    return ((n + m - 1) // m) * m


def mlp_classifier_forward(x, params, block_b=2048):
    """x: (B, input_dim) f32 or bf16. params: (in,out) weights + (1,out) biases."""
    w1 = params["w1"].astype(jnp.bfloat16)
    w2 = params["w2"].astype(jnp.bfloat16)
    b1 = params["b1"].astype(jnp.float32).reshape(1, -1)
    b2 = params["b2"].astype(jnp.float32).reshape(1, -1)
    w3t = params["w3"].astype(jnp.bfloat16).T               # (out_dim, H2)
    b3 = params["b3"].astype(jnp.float32).reshape(-1, 1)    # (out_dim, 1)

    B, in_dim = x.shape
    hid1 = w1.shape[1]
    hid2, out_dim = params["w3"].shape

    # ---- batch tile selection -------------------------------------------
    # Multiple of 128 so the lane-dense output block tiles cleanly; large by
    # default (amortize per-step overhead), but capped so mid-size batches
    # still produce ~>=4 grid steps (v7x megacore + pipelining overlap).
    b_min = _round_up(B, LANE)
    tb = min(_round_up(max(block_b, LANE), LANE), b_min)
    if b_min > 4 * LANE:
        tb = min(tb, _round_up(-(-b_min // 4), LANE))
    b_pad = _round_up(B, tb)
    if b_pad != B:
        x = jnp.pad(x, ((0, b_pad - B), (0, 0)))
    grid = (b_pad // tb,)

    # ---- VMEM budget ------------------------------------------------------
    # x tile is lane-padded to 128 in VMEM (x2 double buffer) + f32 h1/h2
    # scratch; output tile is tiny now.  Explicit limit so large block_b
    # still compiles on v5e's 16 MiB scoped default; never ask above 32 MiB.
    vmem_limit = int(min(max(4 * tb * LANE * 4 + (2 << 20), 8 << 20), 32 << 20))

    flops = 2 * b_pad * (in_dim * hid1 + hid1 * hid2 + hid2 * out_dim)
    bytes_accessed = (x.size * x.dtype.itemsize
                      + b_pad * out_dim * 4
                      + sum(int(a.size) * a.dtype.itemsize
                            for a in (w1, b1, w2, b2, w3t, b3)))

    # Weights/biases: constant block index across the batch grid -> DMA'd once,
    # resident in VMEM for every batch tile.
    resident = lambda a: pl.BlockSpec(a.shape, lambda i: (0, 0))

    out_t = pl.pallas_call(
        mlp_kernel,
        out_shape=jax.ShapeDtypeStruct((out_dim, b_pad), jnp.float32),
        grid=grid,
        in_specs=[
            pl.BlockSpec((tb, in_dim), lambda i: (i, 0)),   # x: tiled over batch
            resident(w1), resident(b1),
            resident(w2), resident(b2),
            resident(w3t), resident(b3),
        ],
        out_specs=pl.BlockSpec((out_dim, tb), lambda i: (0, i)),
        compiler_params=pltpu.CompilerParams(
            dimension_semantics=("parallel",),
            vmem_limit_bytes=vmem_limit),
        cost_estimate=pl.CostEstimate(
            flops=flops, transcendentals=0, bytes_accessed=bytes_accessed),
    )(x, w1, b1, w2, b2, w3t, b3)

    # (out_dim, b_pad) -> (B, out_dim); for out_dim == 1 this is a contiguous
    # reshape + slice (no strided 1-lane gather).
    return out_t.T[:B]


def init_params(key, input_dim, hidden_dim=64, output_dim=1):
    """Deterministic init mimicking PyTorch Linear default (U(-1/sqrt(fan_in), +))."""
    dims = [(input_dim, hidden_dim),
            (hidden_dim, hidden_dim // 2),
            (hidden_dim // 2, output_dim)]
    params = {}
    for i, (fin, fout) in enumerate(dims, start=1):
        key, kw, kb = jax.random.split(key, 3)
        bound = 1.0 / (fin ** 0.5)
        params[f"w{i}"] = jax.random.uniform(
            kw, (fin, fout), jnp.float32, minval=-bound, maxval=bound)
        params[f"b{i}"] = jax.random.uniform(
            kb, (1, fout), jnp.float32, minval=-bound, maxval=bound)
    return params


def reference_forward(x, params):
    """Pure-JAX reference with the same numerics (bf16 operands, f32 accum)."""
    w1 = params["w1"].astype(jnp.bfloat16)
    w2 = params["w2"].astype(jnp.bfloat16)
    w3 = params["w3"].astype(jnp.bfloat16)
    h1 = jnp.maximum(
        jnp.dot(x.astype(jnp.bfloat16), w1, preferred_element_type=jnp.float32)
        + params["b1"], 0.0)
    h2 = jnp.maximum(
        jnp.dot(h1.astype(jnp.bfloat16), w2, preferred_element_type=jnp.float32)
        + params["b2"], 0.0)
    return (jnp.dot(h2.astype(jnp.bfloat16), w3, preferred_element_type=jnp.float32)
            + params["b3"])


if __name__ == "__main__":
    key = jax.random.PRNGKey(0)
    batch, input_dim, hidden_dim, output_dim = 2, 16, 64, 1

    key, kx, kx2, kp = jax.random.split(key, 4)
    params = init_params(kp, input_dim, hidden_dim, output_dim)

    # Small batch (single-tile path).
    x = jax.random.normal(kx, (batch, input_dim), jnp.float32)
    out = jax.block_until_ready(mlp_classifier_forward(x, params))
    ref = reference_forward(x, params)
    assert out.shape == (batch, output_dim)
    assert jnp.allclose(out, ref, atol=1e-3, rtol=1e-3)

    # Larger batch with a small tile to exercise the multi-step grid +
    # pipelined path (grid = 6 here).
    x2 = jax.random.normal(kx2, (1500, input_dim), jnp.float32)
    out2 = jax.block_until_ready(mlp_classifier_forward(x2, params, block_b=256))
    ref2 = reference_forward(x2, params)
    assert out2.shape == (1500, output_dim)
    assert jnp.allclose(out2, ref2, atol=1e-3, rtol=1e-3)

    print("KERNEL_OK")
</pallas_src>

<mosaic_0001>
module attributes {stable_mosaic.version = 11 : i64} {
  func.func @mlp_kernel(%arg0: i32, %arg1: memref<128x16xf32, #tpu.memory_space<vmem>>, %arg2: memref<16x64xbf16, #tpu.memory_space<vmem>>, %arg3: memref<1x64xf32, #tpu.memory_space<vmem>>, %arg4: memref<64x32xbf16, #tpu.memory_space<vmem>>, %arg5: memref<1x32xf32, #tpu.memory_space<vmem>>, %arg6: memref<1x32xbf16, #tpu.memory_space<vmem>>, %arg7: memref<1x1xf32, #tpu.memory_space<vmem>>, %arg8: memref<1x128xf32, #tpu.memory_space<vmem>>) attributes {dimension_semantics = [#tpu.dimension_semantics<parallel>], iteration_bounds = array<i64: 1>, scalar_prefetch = 0 : i64, scratch_operands = 0 : i64, tpu.core_type = #tpu.core_type<tc>, window_params = [{transform_indices = @transform_0, window_bounds = array<i64: 128, 16>}, {pipeline_mode = #tpu.pipeline_mode<synchronous>, transform_indices = @transform_1, window_bounds = array<i64: 16, 64>}, {pipeline_mode = #tpu.pipeline_mode<synchronous>, transform_indices = @transform_2, window_bounds = array<i64: 1, 64>}, {pipeline_mode = #tpu.pipeline_mode<synchronous>, transform_indices = @transform_3, window_bounds = array<i64: 64, 32>}, {pipeline_mode = #tpu.pipeline_mode<synchronous>, transform_indices = @transform_4, window_bounds = array<i64: 1, 32>}, {pipeline_mode = #tpu.pipeline_mode<synchronous>, transform_indices = @transform_5, window_bounds = array<i64: 1, 32>}, {pipeline_mode = #tpu.pipeline_mode<synchronous>, transform_indices = @transform_6, window_bounds = array<i64: 1, 1>}, {transform_indices = @transform_7, window_bounds = array<i64: 1, 128>}]} {
    %c0 = arith.constant 0 : index
    %c0_0 = arith.constant 0 : index
    %0 = vector.load %arg1[%c0, %c0_0] : memref<128x16xf32, #tpu.memory_space<vmem>>, vector<128x16xf32>
    %1 = arith.truncf %0 : vector<128x16xf32> to vector<128x16xbf16>
    %c0_1 = arith.constant 0 : index
    %c0_2 = arith.constant 0 : index
    %2 = vector.load %arg2[%c0_1, %c0_2] : memref<16x64xbf16, #tpu.memory_space<vmem>>, vector<16x64xbf16>
    %cst = arith.constant dense<0.000000e+00> : vector<128x64xf32>
    %3 = tpu.matmul %1, %2, %cst {dimension_numbers = #tpu.dot_dimension_numbers<[1], [0], [0], [1], [0, 0, 1, 1], [], []>} : vector<128x16xbf16>, vector<16x64xbf16>, vector<128x64xf32> -> vector<128x64xf32>
    %c0_3 = arith.constant 0 : index
    %c0_4 = arith.constant 0 : index
    %4 = vector.load %arg3[%c0_3, %c0_4] : memref<1x64xf32, #tpu.memory_space<vmem>>, vector<1x64xf32>
    %5 = vector.broadcast %4 : vector<1x64xf32> to vector<128x64xf32>
    %6 = arith.addf %3, %5 : vector<128x64xf32>
    %cst_5 = arith.constant 0.000000e+00 : f32
    %7 = vector.broadcast %cst_5 : f32 to vector<128x64xf32>
    %8 = arith.maximumf %6, %7 : vector<128x64xf32>
    %9 = arith.truncf %8 : vector<128x64xf32> to vector<128x64xbf16>
    %c0_6 = arith.constant 0 : index
    %c0_7 = arith.constant 0 : index
    %10 = vector.load %arg4[%c0_6, %c0_7] : memref<64x32xbf16, #tpu.memory_space<vmem>>, vector<64x32xbf16>
    %cst_8 = arith.constant dense<0.000000e+00> : vector<128x32xf32>
    %11 = tpu.matmul %9, %10, %cst_8 {dimension_numbers = #tpu.dot_dimension_numbers<[1], [0], [0], [1], [0, 0, 1, 1], [], []>} : vector<128x64xbf16>, vector<64x32xbf16>, vector<128x32xf32> -> vector<128x32xf32>
    %c0_9 = arith.constant 0 : index
    %c0_10 = arith.constant 0 : index
    %12 = vector.load %arg5[%c0_9, %c0_10] : memref<1x32xf32, #tpu.memory_space<vmem>>, vector<1x32xf32>
    %13 = vector.broadcast %12 : vector<1x32xf32> to vector<128x32xf32>
    %14 = arith.addf %11, %13 : vector<128x32xf32>
    %cst_11 = arith.constant 0.000000e+00 : f32
    %15 = vector.broadcast %cst_11 : f32 to vector<128x32xf32>
    %16 = arith.maximumf %14, %15 : vector<128x32xf32>
    %c0_12 = arith.constant 0 : index
    %c0_13 = arith.constant 0 : index
    %17 = vector.load %arg6[%c0_12, %c0_13] : memref<1x32xbf16, #tpu.memory_space<vmem>>, vector<1x32xbf16>
    %18 = arith.truncf %16 : vector<128x32xf32> to vector<128x32xbf16>
    %cst_14 = arith.constant dense<0.000000e+00> : vector<1x128xf32>
    %19 = tpu.matmul %17, %18, %cst_14 {dimension_numbers = #tpu.dot_dimension_numbers<[1], [1], [0], [0], [0, 0, 1, 0], [], []>} : vector<1x32xbf16>, vector<128x32xbf16>, vector<1x128xf32> -> vector<1x128xf32>
    %c0_15 = arith.constant 0 : index
    %c0_16 = arith.constant 0 : index
    %20 = vector.load %arg7[%c0_15, %c0_16] : memref<1x1xf32, #tpu.memory_space<vmem>>, vector<1x1xf32>
    %21 = vector.broadcast %20 : vector<1x1xf32> to vector<1x128xf32>
    %22 = arith.addf %19, %21 : vector<1x128xf32>
    %c0_17 = arith.constant 0 : index
    %c0_18 = arith.constant 0 : index
    %23 = vector.load %arg8[%c0_17, %c0_18] : memref<1x128xf32, #tpu.memory_space<vmem>>, vector<1x128xf32>
    tpu.vector_store %arg8[%c0_17, %c0_18], %22 {strides = array<i32>} : memref<1x128xf32, #tpu.memory_space<vmem>>, vector<1x128xf32>,
    return
  }
  func.func @transform_0(%arg0: i32) -> (i32, i32) {
    %c0_i32 = arith.constant 0 : i32
    %c0_i32_0 = arith.constant 0 : i32
    return %arg0, %c0_i32 : i32, i32
  }
  func.func @transform_1(%arg0: i32) -> (i32, i32) {
    %c0_i32 = arith.constant 0 : i32
    %c0_i32_0 = arith.constant 0 : i32
    %c0_i32_1 = arith.constant 0 : i32
    return %c0_i32, %c0_i32_0 : i32, i32
  }
  func.func @transform_2(%arg0: i32) -> (i32, i32) {
    %c0_i32 = arith.constant 0 : i32
    %c0_i32_0 = arith.constant 0 : i32
    %c0_i32_1 = arith.constant 0 : i32
    return %c0_i32, %c0_i32_0 : i32, i32
  }
  func.func @transform_3(%arg0: i32) -> (i32, i32) {
    %c0_i32 = arith.constant 0 : i32
    %c0_i32_0 = arith.constant 0 : i32
    %c0_i32_1 = arith.constant 0 : i32
    return %c0_i32, %c0_i32_0 : i32, i32
  }
  func.func @transform_4(%arg0: i32) -> (i32, i32) {
    %c0_i32 = arith.constant 0 : i32
    %c0_i32_0 = arith.constant 0 : i32
    %c0_i32_1 = arith.constant 0 : i32
    return %c0_i32, %c0_i32_0 : i32, i32
  }
  func.func @transform_5(%arg0: i32) -> (i32, i32) {
    %c0_i32 = arith.constant 0 : i32
    %c0_i32_0 = arith.constant 0 : i32
    %c0_i32_1 = arith.constant 0 : i32
    return %c0_i32, %c0_i32_0 : i32, i32
  }
  func.func @transform_6(%arg0: i32) -> (i32, i32) {
    %c0_i32 = arith.constant 0 : i32
    %c0_i32_0 = arith.constant 0 : i32
    %c0_i32_1 = arith.constant 0 : i32
    return %c0_i32, %c0_i32_0 : i32, i32
  }
  func.func @transform_7(%arg0: i32) -> (i32, i32) {
    %c0_i32 = arith.constant 0 : i32
    %c0_i32_0 = arith.constant 0 : i32
    return %c0_i32, %arg0 : i32, i32
  }
}

</mosaic_0001>

<llo_original>
// kernel: tpu_custom_call.1
$region0: #{tpu_custom_call.1}
  #allocation0 [shape = 'u32[]', space=smem, size = 0x4, offset = 0x4, fixed_abs, tag = 'smem constant byte address 0x4 - core index']
  #allocation1 [shape = 'u32[144,128]{1,0:T(1,128)}', space=vmem, size = 0x12000, scoped, tag = 'internal scratch']
  #allocation2 [shape = 'f32[1,1]{1,0:T(1,128)S(1)}', space=vmem, size = 0x200, scoped, tag = 'scoped memory for tpu_custom_call.1']
  %s0 = inlined_call_operand.vmem [shape: f32[128,16], index: 0, kind: input, shape index: {}]
  %s1 = inlined_call_operand.vmem [shape: bf16[16,64], index: 1, kind: input, shape index: {}]
  %s2 = inlined_call_operand.vmem [shape: f32[1,64], index: 2, kind: input, shape index: {}]
  %s3 = inlined_call_operand.vmem [shape: bf16[64,32], index: 3, kind: input, shape index: {}]
  %s4 = inlined_call_operand.vmem [shape: f32[1,32], index: 4, kind: input, shape index: {}]
  %s5 = inlined_call_operand.vmem [shape: bf16[1,32], index: 5, kind: input, shape index: {}]
  %s6 = inlined_call_operand.<no memory space> [shape: f32[1,1], index: 6, kind: input, shape index: {}]
  %s7 = inlined_call_operand.hbm [shape: f32[1,128], index: 7, kind: output, shape index: {}]
  %s8 = sld [smem:[#allocation0]]
  $region38: #{tpu_custom_call.1} parent=0
    _
  %s10 = ssub.s32 1, %s8
  %s11 = scalar_select 0, %s10, %s8
  %v12 = vstv %s6
  %13 = vst [vmem:[#allocation2] sm:$0x1] %v12
  $region1: #{tpu_custom_call.1} parent=0
    #allocation3 [shape = 'u8[512]{0}', space=vmem, size = 0x400, scoped, tag = 'output window, operand 0, single buffered']
    #allocation4 [shape = 's32[1]{0}', space=sflag, size = 0x4, scoped, tag = 'scoped memory for tpu_custom_call.1']
    %14 = vsyncpa [#allocation4], 0
    // Predicated region
    $region2: #{tpu_custom_call.1} parent=1 // pred_check
      _
    $region3: #{tpu_custom_call.1} parent=1 // pred_check_branch
      %16 = sbr.rel (0) target = $region5
    $region4: #{tpu_custom_call.1} parent=1 // pred_region
      _
    $region5: #{tpu_custom_call.1} parent=1 // pred_fallthru
      _
    // Predicated region
    $region6: #{tpu_custom_call.1} parent=1 // pred_check
      _
    $region7: #{tpu_custom_call.1} parent=1 // pred_check_branch
      %18 = sbr.rel (0) target = $region9
    $region8: #{tpu_custom_call.1} parent=1 // pred_region
      _
    $region9: #{tpu_custom_call.1} parent=1 // pred_fallthru
      _
    // Predicated region
    $region10: #{tpu_custom_call.1} parent=1 // pred_check
      _
    $region11: #{tpu_custom_call.1} parent=1 // pred_check_branch
      %20 = sbr.rel (0) target = $region13
    $region12: #{tpu_custom_call.1} parent=1 // pred_region
      _
    $region13: #{tpu_custom_call.1} parent=1 // pred_fallthru
      _
    // Predicated region
    $region14: #{tpu_custom_call.1} parent=1 // pred_check
      _
    $region15: #{tpu_custom_call.1} parent=1 // pred_check_branch
      %22 = sbr.rel (0) target = $region17
    $region16: #{tpu_custom_call.1} parent=1 // pred_region
      _
    $region17: #{tpu_custom_call.1} parent=1 // pred_fallthru
      _
    // Predicated region
    $region18: #{tpu_custom_call.1} parent=1 // pred_check
      _
    $region19: #{tpu_custom_call.1} parent=1 // pred_check_branch
      %24 = sbr.rel (0) target = $region21
    $region20: #{tpu_custom_call.1} parent=1 // pred_region
      _
    $region21: #{tpu_custom_call.1} parent=1 // pred_fallthru
      _
    // Predicated region
    $region22: #{tpu_custom_call.1} parent=1 // pred_check
      _
    $region23: #{tpu_custom_call.1} parent=1 // pred_check_branch
      %26 = sbr.rel (0) target = $region25
    $region24: #{tpu_custom_call.1} parent=1 // pred_region
      _
    $region25: #{tpu_custom_call.1} parent=1 // pred_fallthru
      _
    // Predicated region
    $region26: #{tpu_custom_call.1} parent=1 // pred_check
      _
    $region27: #{tpu_custom_call.1} parent=1 // pred_check_branch
      %28 = sbr.rel (0) target = $region29
    $region28: #{tpu_custom_call.1} parent=1 // pred_region
      _
    $region29: #{tpu_custom_call.1} parent=1 // pred_fallthru
      _
    %v30 = vld [vmem:[%s0] sm:$0xff]
    %v31 = vld [vmem:[%s0 + $0x8] sm:$0xff]
    %v32 = vld [vmem:[%s0 + $0x10] sm:$0xff]
    %v33 = vld [vmem:[%s0 + $0x18] sm:$0xff]
    %v34 = vld [vmem:[%s0 + $0x20] sm:$0xff]
    %v35 = vld [vmem:[%s0 + $0x28] sm:$0xff]
    %v36 = vld [vmem:[%s0 + $0x30] sm:$0xff]
    %v37 = vld [vmem:[%s0 + $0x38] sm:$0xff]
    %v38 = vld [vmem:[%s0 + $0x40] sm:$0xff]
    %v39 = vld [vmem:[%s0 + $0x48] sm:$0xff]
    %v40 = vld [vmem:[%s0 + $0x50] sm:$0xff]
    %v41 = vld [vmem:[%s0 + $0x58] sm:$0xff]
    %v42 = vld [vmem:[%s0 + $0x60] sm:$0xff]
    %v43 = vld [vmem:[%s0 + $0x68] sm:$0xff]
    %v44 = vld [vmem:[%s0 + $0x70] sm:$0xff]
    %v45 = vld [vmem:[%s0 + $0x78] sm:$0xff]
    %v46 = vpack.c.bf16 %v31, %v30
    %v47 = vpack.c.bf16 %v33, %v32
    %v48 = vpack.c.bf16 %v35, %v34
    %v49 = vpack.c.bf16 %v37, %v36
    %v50 = vpack.c.bf16 %v39, %v38
    %v51 = vpack.c.bf16 %v41, %v40
    %v52 = vpack.c.bf16 %v43, %v42
    %v53 = vpack.c.bf16 %v45, %v44
    %v54 = vld [vmem:[%s1] sm:$0xf]
    %v55 = vld [vmem:[%s1 + $0x4] sm:$0xf]
    %v56 = vld [vmem:[%s2] sm:$0x1]
    %v58 = vlaneseq
    %v59 = vshrl.u32 %v58, 7
    %v60 = vsub.s32 0, %v59
    %v61 = vrot.slane %v56, %v60
    %v65 = vunpack.c.l.b16 %v54
    %v66 = vunpack.c.l.b16 %v55
    %v67 = vpack.c.b16 %v66, %v65
    %vm69 = vcmask 130048
    %v71 = vsel %vm69, %v46, 0
    %v74 = vsel %vm69, %v47, 0
    %v77 = vsel %vm69, %v48, 0
    %v80 = vsel %vm69, %v49, 0
    %v83 = vsel %vm69, %v50, 0
    %v86 = vsel %vm69, %v51, 0
    %v89 = vsel %vm69, %v52, 0
    %v92 = vsel %vm69, %v53, 0
    %94 = vmatprep.subr.bf16.mxu0 0
    %95 = vmatpush1.bf16.msra.mxu0 %v67
    %96 = vmatprep.subr.bf16.mxu0 0
    %97 = vmatpush1.bf16.msra.mxu0 0
    %98 = vmatprep.subr.bf16.mxu0 0
    %99 = vmatpush1.bf16.msra.mxu0 0
    %100 = vmatprep.subr.bf16.mxu0 0
    %101 = vmatpush1.bf16.msra.mxu0 0
    %102 = vmatprep.subr.bf16.mxu0 0
    %103 = vmatpush1.bf16.msra.mxu0 0
    %104 = vmatprep.subr.bf16.mxu0 0
    %105 = vmatpush1.bf16.msra.mxu0 0
    %106 = vmatprep.subr.bf16.mxu0 0
    %107 = vmatpush1.bf16.msra.mxu0 0
    %108 = vmatprep.subr.bf16.mxu0 0
    %109 = vmatpush1.bf16.msra.mxu0 0
    %110 = vmatprep.subr.bf16.mxu0 0
    %111 = vmatpush1.bf16.msra.mxu0 0
    %112 = vmatprep.subr.bf16.mxu0 0
    %113 = vmatpush1.bf16.msra.mxu0 0
    %114 = vmatprep.subr.bf16.mxu0 0
    %115 = vmatpush1.bf16.msra.mxu0 0
    %116 = vmatprep.subr.bf16.mxu0 0
    %117 = vmatpush1.bf16.msra.mxu0 0
    %118 = vmatprep.subr.bf16.mxu0 0
    %119 = vmatpush1.bf16.msra.mxu0 0
    %120 = vmatprep.subr.bf16.mxu0 0
    %121 = vmatpush1.bf16.msra.mxu0 0
    %122 = vmatprep.subr.bf16.mxu0 0
    %123 = vmatpush1.bf16.msra.mxu0 0
    %124 = vmatprep.subr.bf16.mxu0 0
    %125 = vmatpush1.bf16.msra.mxu0 0
    %126 = vmatprep.mubr.bf16.mxu0 0
    %127 = vmatmul.mubr.bf16.gmra.mrb[0].mxu0 %v71
    %v128 = vpop.f32.mrb[0].mxu0
    %v129 = vadd.f32 %v61, %v128
    %v130 = vpop.f32.mrb[0].mxu0
    %v131 = vpop.f32.mrb[0].mxu0
    %v132 = vadd.f32 %v61, %v131
    %v133 = vpop.f32.mrb[0].mxu0
    %134 = vmatprep.mubr.bf16.mxu0 0
    %135 = vmatmul.mubr.bf16.gmra.mrb[0].mxu0 %v74
    %v136 = vpop.f32.mrb[0].mxu0
    %v137 = vadd.f32 %v61, %v136
    %v138 = vpop.f32.mrb[0].mxu0
    %v139 = vpop.f32.mrb[0].mxu0
    %v140 = vadd.f32 %v61, %v139
    %v141 = vpop.f32.mrb[0].mxu0
    %142 = vmatprep.mubr.bf16.mxu0 0
    %143 = vmatmul.mubr.bf16.gmra.mrb[0].mxu0 %v77
    %v144 = vpop.f32.mrb[0].mxu0
    %v145 = vadd.f32 %v61, %v144
    %v146 = vpop.f32.mrb[0].mxu0
    %v147 = vpop.f32.mrb[0].mxu0
    %v148 = vadd.f32 %v61, %v147
    %v149 = vpop.f32.mrb[0].mxu0
    %150 = vmatprep.mubr.bf16.mxu0 0
    %151 = vmatmul.mubr.bf16.gmra.mrb[0].mxu0 %v80
    %v152 = vpop.f32.mrb[0].mxu0
    %v153 = vadd.f32 %v61, %v152
    %v154 = vpop.f32.mrb[0].mxu0
    %v155 = vpop.f32.mrb[0].mxu0
    %v156 = vadd.f32 %v61, %v155
    %v157 = vpop.f32.mrb[0].mxu0
    %158 = vmatprep.mubr.bf16.mxu0 0
    %159 = vmatmul.mubr.bf16.gmra.mrb[0].mxu0 %v83
    %v160 = vpop.f32.mrb[0].mxu0
    %v161 = vadd.f32 %v61, %v160
    %v162 = vpop.f32.mrb[0].mxu0
    %v163 = vpop.f32.mrb[0].mxu0
    %v164 = vadd.f32 %v61, %v163
    %v165 = vpop.f32.mrb[0].mxu0
    %166 = vmatprep.mubr.bf16.mxu0 0
    %167 = vmatmul.mubr.bf16.gmra.mrb[0].mxu0 %v86
    %v168 = vpop.f32.mrb[0].mxu0
    %v169 = vadd.f32 %v61, %v168
    %v170 = vpop.f32.mrb[0].mxu0
    %v171 = vpop.f32.mrb[0].mxu0
    %v172 = vadd.f32 %v61, %v171
    %v173 = vpop.f32.mrb[0].mxu0
    %174 = vmatprep.mubr.bf16.mxu0 0
    %175 = vmatmul.mubr.bf16.gmra.mrb[0].mxu0 %v89
    %v176 = vpop.f32.mrb[0].mxu0
    %v177 = vadd.f32 %v61, %v176
    %v178 = vpop.f32.mrb[0].mxu0
    %v179 = vpop.f32.mrb[0].mxu0
    %v180 = vadd.f32 %v61, %v179
    %v181 = vpop.f32.mrb[0].mxu0
    %182 = vmatprep.mubr.bf16.mxu0 0
    %183 = vmatmul.mubr.bf16.gmra.mrb[0].mxu0 %v92
    %v184 = vpop.f32.mrb[0].mxu0
    %v185 = vadd.f32 %v61, %v184
    %v186 = vpop.f32.mrb[0].mxu0
    %v187 = vpop.f32.mrb[0].mxu0
    %v188 = vadd.f32 %v61, %v187
    %v189 = vpop.f32.mrb[0].mxu0
    %190 = vdwg.mxu0
    %v191 = vmax.f32 %v129, 0.0
    %v192 = vmax.f32 %v132, 0.0
    %v193 = vmax.f32 %v137, 0.0
    %v194 = vmax.f32 %v140, 0.0
    %v195 = vmax.f32 %v145, 0.0
    %v196 = vmax.f32 %v148, 0.0
    %v197 = vmax.f32 %v153, 0.0
    %v198 = vmax.f32 %v156, 0.0
    %v199 = vmax.f32 %v161, 0.0
    %v200 = vmax.f32 %v164, 0.0
    %v201 = vmax.f32 %v169, 0.0
    %v202 = vmax.f32 %v172, 0.0
    %v203 = vmax.f32 %v177, 0.0
    %v204 = vmax.f32 %v180, 0.0
    %v205 = vmax.f32 %v185, 0.0
    %v206 = vmax.f32 %v188, 0.0
    %v207 = vpack.c.bf16 %v192, %v191
    %v208 = vpack.c.bf16 %v194, %v193
    %v209 = vpack.c.bf16 %v196, %v195
    %v210 = vpack.c.bf16 %v198, %v197
    %v211 = vpack.c.bf16 %v200, %v199
    %v212 = vpack.c.bf16 %v202, %v201
    %v213 = vpack.c.bf16 %v204, %v203
    %v214 = vpack.c.bf16 %v206, %v205
    %v215 = vld [vmem:[%s3] sm:$0xf]
    %v216 = vld [vmem:[%s3 + $0x4] sm:$0xf]
    %v217 = vld [vmem:[%s3 + $0x8] sm:$0xf]
    %v218 = vld [vmem:[%s3 + $0xc] sm:$0xf]
    %v219 = vld [vmem:[%s3 + $0x10] sm:$0xf]
    %v220 = vld [vmem:[%s3 + $0x14] sm:$0xf]
    %v221 = vld [vmem:[%s3 + $0x18] sm:$0xf]
    %v222 = vld [vmem:[%s3 + $0x1c] sm:$0xf]
    %v223 = vld [vmem:[%s4] sm:$0x1]
    %v225 = vlaneseq
    %v226 = vshrl.u32 %v225, 7
    %v227 = vsub.s32 0, %v226
    %v228 = vrot.slane %v223, %v227
    %v238 = vunpack.c.l.b16 %v215
    %v239 = vunpack.c.l.b16 %v216
    %v240 = vunpack.c.l.b16 %v217
    %v241 = vunpack.c.l.b16 %v218
    %v242 = vunpack.c.l.b16 %v219
    %v243 = vunpack.c.l.b16 %v220
    %v244 = vunpack.c.l.b16 %v221
    %v245 = vunpack.c.l.b16 %v222
    %v246 = vpack.c.b16 %v239, %v238
    %v247 = vpack.c.b16 %v241, %v240
    %v248 = vpack.c.b16 %v243, %v242
    %v249 = vpack.c.b16 %v245, %v244
    %vm254 = vcmask 523264
    %v256 = vsel %vm254, %v207, 0
    %v259 = vsel %vm254, %v208, 0
    %v262 = vsel %vm254, %v209, 0
    %v265 = vsel %vm254, %v210, 0
    %v268 = vsel %vm254, %v211, 0
    %v271 = vsel %vm254, %v212, 0
    %v274 = vsel %vm254, %v213, 0
    %v277 = vsel %vm254, %v214, 0
    %279 = vmatprep.subr.bf16.mxu0 0
    %280 = vmatpush1.bf16.msra.mxu0 %v246
    %281 = vmatprep.subr.bf16.mxu0 0
    %282 = vmatpush1.bf16.msra.mxu0 %v247
    %283 = vmatprep.subr.bf16.mxu0 0
    %284 = vmatpush1.bf16.msra.mxu0 %v248
    %285 = vmatprep.subr.bf16.mxu0 0
    %286 = vmatpush1.bf16.msra.mxu0 %v249
    %287 = vmatprep.subr.bf16.mxu0 0
    %288 = vmatpush1.bf16.msra.mxu0 0
    %289 = vmatprep.subr.bf16.mxu0 0
    %290 = vmatpush1.bf16.msra.mxu0 0
    %291 = vmatprep.subr.bf16.mxu0 0
    %292 = vmatpush1.bf16.msra.mxu0 0
    %293 = vmatprep.subr.bf16.mxu0 0
    %294 = vmatpush1.bf16.msra.mxu0 0
    %295 = vmatprep.subr.bf16.mxu0 0
    %296 = vmatpush1.bf16.msra.mxu0 0
    %297 = vmatprep.subr.bf16.mxu0 0
    %298 = vmatpush1.bf16.msra.mxu0 0
    %299 = vmatprep.subr.bf16.mxu0 0
    %300 = vmatpush1.bf16.msra.mxu0 0
    %301 = vmatprep.subr.bf16.mxu0 0
    %302 = vmatpush1.bf16.msra.mxu0 0
    %303 = vmatprep.subr.bf16.mxu0 0
    %304 = vmatpush1.bf16.msra.mxu0 0
    %305 = vmatprep.subr.bf16.mxu0 0
    %306 = vmatpush1.bf16.msra.mxu0 0
    %307 = vmatprep.subr.bf16.mxu0 0
    %308 = vmatpush1.bf16.msra.mxu0 0
    %309 = vmatprep.subr.bf16.mxu0 0
    %310 = vmatpush1.bf16.msra.mxu0 0
    %311 = vmatprep.mubr.bf16.mxu0 0
    %312 = vmatmul.mubr.bf16.gmra.mrb[0].mxu0 %v256
    %v313 = vpop.f32.mrb[0].mxu0
    %v314 = vadd.f32 %v228, %v313
    %v315 = vpop.f32.mrb[0].mxu0
    %v316 = vpop.f32.mrb[0].mxu0
    %v317 = vadd.f32 %v228, %v316
    %v318 = vpop.f32.mrb[0].mxu0
    %319 = vmatprep.mubr.bf16.mxu0 0
    %320 = vmatmul.mubr.bf16.gmra.mrb[0].mxu0 %v259
    %v321 = vpop.f32.mrb[0].mxu0
    %v322 = vadd.f32 %v228, %v321
    %v323 = vpop.f32.mrb[0].mxu0
    %v324 = vpop.f32.mrb[0].mxu0
    %v325 = vadd.f32 %v228, %v324
    %v326 = vpop.f32.mrb[0].mxu0
    %327 = vmatprep.mubr.bf16.mxu0 0
    %328 = vmatmul.mubr.bf16.gmra.mrb[0].mxu0 %v262
    %v329 = vpop.f32.mrb[0].mxu0
    %v330 = vadd.f32 %v228, %v329
    %v331 = vpop.f32.mrb[0].mxu0
    %v332 = vpop.f32.mrb[0].mxu0
    %v333 = vadd.f32 %v228, %v332
    %v334 = vpop.f32.mrb[0].mxu0
    %335 = vmatprep.mubr.bf16.mxu0 0
    %336 = vmatmul.mubr.bf16.gmra.mrb[0].mxu0 %v265
    %v337 = vpop.f32.mrb[0].mxu0
    %v338 = vadd.f32 %v228, %v337
    %v339 = vpop.f32.mrb[0].mxu0
    %v340 = vpop.f32.mrb[0].mxu0
    %v341 = vadd.f32 %v228, %v340
    %v342 = vpop.f32.mrb[0].mxu0
    %343 = vmatprep.mubr.bf16.mxu0 0
    %344 = vmatmul.mubr.bf16.gmra.mrb[0].mxu0 %v268
    %v345 = vpop.f32.mrb[0].mxu0
    %v346 = vadd.f32 %v228, %v345
    %v347 = vpop.f32.mrb[0].mxu0
    %v348 = vpop.f32.mrb[0].mxu0
    %v349 = vadd.f32 %v228, %v348
    %v350 = vpop.f32.mrb[0].mxu0
    %351 = vmatprep.mubr.bf16.mxu0 0
    %352 = vmatmul.mubr.bf16.gmra.mrb[0].mxu0 %v271
    %v353 = vpop.f32.mrb[0].mxu0
    %v354 = vadd.f32 %v228, %v353
    %v355 = vpop.f32.mrb[0].mxu0
    %v356 = vpop.f32.mrb[0].mxu0
    %v357 = vadd.f32 %v228, %v356
    %v358 = vpop.f32.mrb[0].mxu0
    %359 = vmatprep.mubr.bf16.mxu0 0
    %360 = vmatmul.mubr.bf16.gmra.mrb[0].mxu0 %v274
    %v361 = vpop.f32.mrb[0].mxu0
    %v362 = vadd.f32 %v228, %v361
    %v363 = vpop.f32.mrb[0].mxu0
    %v364 = vpop.f32.mrb[0].mxu0
    %v365 = vadd.f32 %v228, %v364
    %v366 = vpop.f32.mrb[0].mxu0
    %367 = vmatprep.mubr.bf16.mxu0 0
    %368 = vmatmul.mubr.bf16.gmra.mrb[0].mxu0 %v277
    %v369 = vpop.f32.mrb[0].mxu0
    %v370 = vadd.f32 %v228, %v369
    %v371 = vpop.f32.mrb[0].mxu0
    %v372 = vpop.f32.mrb[0].mxu0
    %v373 = vadd.f32 %v228, %v372
    %v374 = vpop.f32.mrb[0].mxu0
    %375 = vdwg.mxu0
    %v376 = vmax.f32 %v314, 0.0
    %v377 = vmax.f32 %v317, 0.0
    %v378 = vmax.f32 %v322, 0.0
    %v379 = vmax.f32 %v325, 0.0
    %v380 = vmax.f32 %v330, 0.0
    %v381 = vmax.f32 %v333, 0.0
    %v382 = vmax.f32 %v338, 0.0
    %v383 = vmax.f32 %v341, 0.0
    %v384 = vmax.f32 %v346, 0.0
    %v385 = vmax.f32 %v349, 0.0
    %v386 = vmax.f32 %v354, 0.0
    %v387 = vmax.f32 %v357, 0.0
    %v388 = vmax.f32 %v362, 0.0
    %v389 = vmax.f32 %v365, 0.0
    %v390 = vmax.f32 %v370, 0.0
    %v391 = vmax.f32 %v373, 0.0
    %v392 = vld [vmem:[%s5] sm:$0x1]
    %v393 = vpack.c.bf16 %v377, %v376
    %v394 = vpack.c.bf16 %v379, %v378
    %v395 = vpack.c.bf16 %v381, %v380
    %v396 = vpack.c.bf16 %v383, %v382
    %v397 = vpack.c.bf16 %v385, %v384
    %v398 = vpack.c.bf16 %v387, %v386
    %v399 = vpack.c.bf16 %v389, %v388
    %v400 = vpack.c.bf16 %v391, %v390
    %v401 = vld [vmem:[#allocation2] sm:$0x1]
    %403 = vset.pattern.permute.xlu0 0
    %404 = vperm.xlu0 %403, %v401
    %v405 = vpop.permute.xlu0 %404
    %v407 = vlaneseq
    %v408 = vshrl.u32 %v407, 7
    %v409 = vsub.s32 0, %v408
    %v410 = vrot.slane %v405, %v409
    %vm411 = vcmask 261120
    %v413 = vsel %vm411, %v392, 0
    %v416 = vsel %vm411, %v393, 0
    %v419 = vsel %vm411, %v394, 0
    %v422 = vsel %vm411, %v395, 0
    %v425 = vsel %vm411, %v396, 0
    %v428 = vsel %vm411, %v397, 0
    %v431 = vsel %vm411, %v398, 0
    %v434 = vsel %vm411, %v399, 0
    %v437 = vsel %vm411, %v400, 0
    %439 = vmatprep.subr.bf16.mxu0 0
    %440 = vmatpush1.bf16.xpose.msra.mxu0 %v416
    %441 = vmatprep.subr.bf16.mxu0 0
    %442 = vmatpush1.bf16.xpose.msra.mxu0 %v419
    %443 = vmatprep.subr.bf16.mxu0 0
    %444 = vmatpush1.bf16.xpose.msra.mxu0 %v422
    %445 = vmatprep.subr.bf16.mxu0 0
    %446 = vmatpush1.bf16.xpose.msra.mxu0 %v425
    %447 = vmatprep.subr.bf16.mxu0 0
    %448 = vmatpush1.bf16.xpose.msra.mxu0 %v428
    %449 = vmatprep.subr.bf16.mxu0 0
    %450 = vmatpush1.bf16.xpose.msra.mxu0 %v431
    %451 = vmatprep.subr.bf16.mxu0 0
    %452 = vmatpush1.bf16.xpose.msra.mxu0 %v434
    %453 = vmatprep.subr.bf16.mxu0 0
    %454 = vmatpush1.bf16.xpose.msra.mxu0 %v437
    %455 = vmatprep.subr.bf16.mxu0 0
    %456 = vmatpush1.bf16.xpose.msra.mxu0 0
    %457 = vmatprep.subr.bf16.mxu0 0
    %458 = vmatpush1.bf16.xpose.msra.mxu0 0
    %459 = vmatprep.subr.bf16.mxu0 0
    %460 = vmatpush1.bf16.xpose.msra.mxu0 0
    %461 = vmatprep.subr.bf16.mxu0 0
    %462 = vmatpush1.bf16.xpose.msra.mxu0 0
    %463 = vmatprep.subr.bf16.mxu0 0
    %464 = vmatpush1.bf16.xpose.msra.mxu0 0
    %465 = vmatprep.subr.bf16.mxu0 0
    %466 = vmatpush1.bf16.xpose.msra.mxu0 0
    %467 = vmatprep.subr.bf16.mxu0 0
    %468 = vmatpush1.bf16.xpose.msra.mxu0 0
    %469 = vmatprep.subr.bf16.mxu0 0
    %470 = vmatpush1.bf16.xpose.msra.mxu0 0
    %471 = vmatprep.mubr.bf16.mxu0 0
    %472 = vmatmul.mubr.bf16.gmra.mrb[0].mxu0 %v413
    %v473 = vpop.f32.mrb[0].mxu0
    %v474 = vadd.f32 %v410, %v473
    %v475 = vpop.f32.mrb[0].mxu0
    %v476 = vpop.f32.mrb[0].mxu0
    %v477 = vpop.f32.mrb[0].mxu0
    %478 = vdwg.mxu0
    %479 = vst [vmem:[#allocation3] sm:$0x1] %v474
    // Predicated region
    $region30: #{tpu_custom_call.1} parent=1 // pred_check
      _
    $region31: #{tpu_custom_call.1} parent=1 // pred_check_branch
      %481 = sbr.rel (0) target = $region33
    $region32: #{tpu_custom_call.1} parent=1 // pred_region
      %s483 = ssub.s32 16, 16
      %484 = vsyncadd [#allocation4], %s483
      %s486 = sshll.u32 [#allocation3], 4
      %s487 = int_to_ptr.vmem [resolvable:$true] %s486
      %489 = dma.vmem_to_hbm [thread:$0]  %s487, 16, %s7, [#allocation4]
    $region33: #{tpu_custom_call.1} parent=1 // pred_fallthru
      _
    // Predicated region
    $region34: #{tpu_custom_call.1} parent=1 // pred_check
      _
    $region35: #{tpu_custom_call.1} parent=1 // pred_check_branch
      %491 = sbr.rel (0) target = $region37
    $region36: #{tpu_custom_call.1} parent=1 // pred_region
      %492 = dma.done [#allocation4], 16
    $region37: #{tpu_custom_call.1} parent=1 // pred_fallthru
      _
    %493 = vsyncpa [#allocation4], 1

</llo_original>
